<compile_context>
chip_gen: v5e
topology: v5e:2x2
jax: 0.10.0
libtpu: 0.0.40
codegen_flags: <defaults>
</compile_context>

<pallas_src>
import functools

import jax
import jax.numpy as jnp
from jax.experimental import pallas as pl
from jax.experimental.pallas import tpu as pltpu


def _round_up(n, m):
    return (n + m - 1) // m * m


def _mlp_kernel(x_ref, w1_ref, b1_ref, w2_ref, b2_ref, w3_ref, b3_ref, o_ref):
    # x_ref: (TM, F) f32 streamed tile; w*: bf16 (out dims lane-padded);
    # b*: f32 (1, N) with b3's padding lanes pre-set to -1e30.
    x = x_ref[...].astype(jnp.bfloat16)

    # Layer 1: Linear + ReLU (MXU bf16 matmul, f32 accumulate). K = 784.
    h1 = jnp.dot(x, w1_ref[...], preferred_element_type=jnp.float32)
    h1 = jnp.maximum(h1 + b1_ref[...], 0.0).astype(jnp.bfloat16)

    # Layer 2: Linear + ReLU
    h2 = jnp.dot(h1, w2_ref[...], preferred_element_type=jnp.float32)
    h2 = jnp.maximum(h2 + b2_ref[...], 0.0).astype(jnp.bfloat16)

    # Layer 3: Linear (logits). Padded w3 columns are zero and padded b3
    # lanes are -1e30, so padded logit lanes are hugely negative and inert.
    logits = jnp.dot(h2, w3_ref[...], preferred_element_type=jnp.float32)
    logits = logits + b3_ref[...]

    # Numerically-stable log_softmax along the lane axis.
    m = jnp.max(logits, axis=-1, keepdims=True)
    shifted = logits - m
    lse = jnp.log(jnp.sum(jnp.exp(shifted), axis=-1, keepdims=True))
    o_ref[...] = (shifted - lse).astype(o_ref.dtype)


def rede_forward(x, padded, *, out_dim):
    """x: (B, input_size) f32. padded: dict of bf16 weights / f32 biases."""
    B, F = x.shape
    w1, b1 = padded["w1"], padded["b1"]
    w2, b2 = padded["w2"], padded["b2"]
    w3, b3 = padded["w3"], padded["b3"]
    assert w1.shape[0] == F, "w1 must keep un-padded K (input_size)"
    H1 = w1.shape[1]
    H2 = w2.shape[1]
    OUTP = w3.shape[1]

    # Batch tile: 512 rows at scale; for moderate batches shrink so there are
    # >= 2 grid steps (both v7x TensorCores get work); tiny demo batches use a
    # single 8-row-aligned tile.
    if B <= 16:
        TM = _round_up(max(B, 1), 8)
    else:
        TM = min(512, _round_up((B + 1) // 2, 8))
    B_pad = _round_up(B, TM)

    # Only pad batch rows (no feature pad, no dtype cast on the host).
    xp = x if B_pad == B else jnp.pad(x, ((0, B_pad - B), (0, 0)))

    grid = (B_pad // TM,)

    flops = 2 * B_pad * (F * H1 + H1 * H2 + H2 * OUTP)
    bytes_accessed = (
        B_pad * F * 4                                        # x (f32, read once)
        + (w1.size + w2.size + w3.size) * 2                  # weights (bf16)
        + (b1.size + b2.size + b3.size) * 4                  # biases (f32)
        + B_pad * OUTP * 4                                   # output slab (f32)
    )

    out = pl.pallas_call(
        _mlp_kernel,
        out_shape=jax.ShapeDtypeStruct((B_pad, OUTP), jnp.float32),
        grid=grid,
        in_specs=[
            pl.BlockSpec((TM, F), lambda i: (i, 0)),         # x tile streams
            pl.BlockSpec((F, H1), lambda i: (0, 0)),         # weights resident
            pl.BlockSpec((1, H1), lambda i: (0, 0)),
            pl.BlockSpec((H1, H2), lambda i: (0, 0)),
            pl.BlockSpec((1, H2), lambda i: (0, 0)),
            pl.BlockSpec((H2, OUTP), lambda i: (0, 0)),
            pl.BlockSpec((1, OUTP), lambda i: (0, 0)),
        ],
        out_specs=pl.BlockSpec((TM, OUTP), lambda i: (i, 0)),
        compiler_params=pltpu.CompilerParams(
            dimension_semantics=("parallel",)),
        cost_estimate=pl.CostEstimate(
            flops=flops,
            transcendentals=B_pad * (OUTP + 1),
            bytes_accessed=bytes_accessed),
    )(xp, w1, b1, w2, b2, w3, b3)

    return out[:B, :out_dim]


def init_params(key, input_size=784, output_size=10, layers=(120, 84)):
    """nn.Linear-style init: U(-1/sqrt(fan_in), 1/sqrt(fan_in)).

    Weights are stored as (in, out) = PyTorch weight.T so the kernel computes
    x @ W directly.
    """
    dims = [input_size, layers[0], layers[1], output_size]
    params = {}
    keys = jax.random.split(key, 6)
    for i in range(3):
        fan_in, fan_out = dims[i], dims[i + 1]
        bound = 1.0 / (fan_in ** 0.5)
        params[f"w{i + 1}"] = jax.random.uniform(
            keys[2 * i], (fan_in, fan_out), jnp.float32, -bound, bound)
        params[f"b{i + 1}"] = jax.random.uniform(
            keys[2 * i + 1], (fan_out,), jnp.float32, -bound, bound)
    return params


def pad_params(params):
    """Prepare kernel weights.

    * w1: K stays un-padded (784); only the output dim is padded to 128.
    * w2, w3: both dims padded to multiples of 128; pad entries are zero.
    * biases -> f32 (1, N_pad); b3's padding lanes are set to -1e30 so the
      kernel needs no explicit output-lane mask before logsumexp.
    * all weights cast to bf16.
    """
    padded = {}
    for i in range(1, 4):
        w = params[f"w{i}"]
        b = params[f"b{i}"]
        in_p = w.shape[0] if i == 1 else _round_up(w.shape[0], 128)
        out_p = _round_up(w.shape[1], 128)
        wp = jnp.zeros((in_p, out_p), jnp.bfloat16)
        wp = wp.at[:w.shape[0], :w.shape[1]].set(w.astype(jnp.bfloat16))
        fill = -1e30 if i == 3 else 0.0
        bp = jnp.full((1, out_p), fill, jnp.float32)
        bp = bp.at[0, :b.shape[0]].set(b)
        padded[f"w{i}"] = wp
        padded[f"b{i}"] = bp
    return padded


def rede_reference(x, params):
    h1 = jnp.maximum(x @ params["w1"] + params["b1"], 0.0)
    h2 = jnp.maximum(h1 @ params["w2"] + params["b2"], 0.0)
    logits = h2 @ params["w3"] + params["b3"]
    return jax.nn.log_softmax(logits, axis=-1)


if __name__ == "__main__":
    key = jax.random.PRNGKey(0)
    pkey, xkey = jax.random.split(key)

    input_size, output_size, layers = 784, 10, (120, 84)
    batch = 8

    params = init_params(pkey, input_size, output_size, layers)
    padded = pad_params(params)
    x = jax.random.normal(xkey, (batch, input_size), dtype=jnp.float32)

    fwd = jax.jit(rede_forward, static_argnames=("out_dim",))
    out = fwd(x, padded, out_dim=output_size)
    out = jax.block_until_ready(out)

    assert out.shape == (batch, output_size)

    # log_softmax rows must exponentiate-sum to ~1 (padding lanes are inert)
    row_sums = jnp.sum(jnp.exp(out), axis=1)
    assert bool(jnp.all(jnp.abs(row_sums - 1.0) < 1e-3))

    # matches the f32 reference up to bf16 matmul rounding
    ref = rede_reference(x, params)
    assert bool(jnp.max(jnp.abs(out - ref)) < 0.1)

    print("KERNEL_OK")
</pallas_src>

<mosaic_0001>
module attributes {stable_mosaic.version = 11 : i64} {
  func.func @_mlp_kernel(%arg0: i32, %arg1: memref<8x784xf32, #tpu.memory_space<vmem>>, %arg2: memref<784x128xbf16, #tpu.memory_space<vmem>>, %arg3: memref<1x128xf32, #tpu.memory_space<vmem>>, %arg4: memref<128x128xbf16, #tpu.memory_space<vmem>>, %arg5: memref<1x128xf32, #tpu.memory_space<vmem>>, %arg6: memref<128x128xbf16, #tpu.memory_space<vmem>>, %arg7: memref<1x128xf32, #tpu.memory_space<vmem>>, %arg8: memref<8x128xf32, #tpu.memory_space<vmem>>) attributes {dimension_semantics = [#tpu.dimension_semantics<parallel>], iteration_bounds = array<i64: 1>, scalar_prefetch = 0 : i64, scratch_operands = 0 : i64, tpu.core_type = #tpu.core_type<tc>, window_params = [{transform_indices = @transform_0, window_bounds = array<i64: 8, 784>}, {pipeline_mode = #tpu.pipeline_mode<synchronous>, transform_indices = @transform_1, window_bounds = array<i64: 784, 128>}, {pipeline_mode = #tpu.pipeline_mode<synchronous>, transform_indices = @transform_2, window_bounds = array<i64: 1, 128>}, {pipeline_mode = #tpu.pipeline_mode<synchronous>, transform_indices = @transform_3, window_bounds = array<i64: 128, 128>}, {pipeline_mode = #tpu.pipeline_mode<synchronous>, transform_indices = @transform_4, window_bounds = array<i64: 1, 128>}, {pipeline_mode = #tpu.pipeline_mode<synchronous>, transform_indices = @transform_5, window_bounds = array<i64: 128, 128>}, {pipeline_mode = #tpu.pipeline_mode<synchronous>, transform_indices = @transform_6, window_bounds = array<i64: 1, 128>}, {transform_indices = @transform_7, window_bounds = array<i64: 8, 128>}]} {
    %c0 = arith.constant 0 : index
    %c0_0 = arith.constant 0 : index
    %0 = vector.load %arg1[%c0, %c0_0] : memref<8x784xf32, #tpu.memory_space<vmem>>, vector<8x784xf32>
    %1 = arith.truncf %0 : vector<8x784xf32> to vector<8x784xbf16>
    %c0_1 = arith.constant 0 : index
    %c0_2 = arith.constant 0 : index
    %2 = vector.load %arg2[%c0_1, %c0_2] : memref<784x128xbf16, #tpu.memory_space<vmem>>, vector<784x128xbf16>
    %cst = arith.constant dense<0.000000e+00> : vector<8x128xf32>
    %3 = tpu.matmul %1, %2, %cst {dimension_numbers = #tpu.dot_dimension_numbers<[1], [0], [0], [1], [0, 0, 1, 1], [], []>} : vector<8x784xbf16>, vector<784x128xbf16>, vector<8x128xf32> -> vector<8x128xf32>
    %c0_3 = arith.constant 0 : index
    %c0_4 = arith.constant 0 : index
    %4 = vector.load %arg3[%c0_3, %c0_4] : memref<1x128xf32, #tpu.memory_space<vmem>>, vector<1x128xf32>
    %5 = vector.broadcast %4 : vector<1x128xf32> to vector<8x128xf32>
    %6 = arith.addf %3, %5 : vector<8x128xf32>
    %cst_5 = arith.constant 0.000000e+00 : f32
    %7 = vector.broadcast %cst_5 : f32 to vector<8x128xf32>
    %8 = arith.maximumf %6, %7 : vector<8x128xf32>
    %9 = arith.truncf %8 : vector<8x128xf32> to vector<8x128xbf16>
    %c0_6 = arith.constant 0 : index
    %c0_7 = arith.constant 0 : index
    %10 = vector.load %arg4[%c0_6, %c0_7] : memref<128x128xbf16, #tpu.memory_space<vmem>>, vector<128x128xbf16>
    %cst_8 = arith.constant dense<0.000000e+00> : vector<8x128xf32>
    %11 = tpu.matmul %9, %10, %cst_8 {dimension_numbers = #tpu.dot_dimension_numbers<[1], [0], [0], [1], [0, 0, 1, 1], [], []>} : vector<8x128xbf16>, vector<128x128xbf16>, vector<8x128xf32> -> vector<8x128xf32>
    %c0_9 = arith.constant 0 : index
    %c0_10 = arith.constant 0 : index
    %12 = vector.load %arg5[%c0_9, %c0_10] : memref<1x128xf32, #tpu.memory_space<vmem>>, vector<1x128xf32>
    %13 = vector.broadcast %12 : vector<1x128xf32> to vector<8x128xf32>
    %14 = arith.addf %11, %13 : vector<8x128xf32>
    %cst_11 = arith.constant 0.000000e+00 : f32
    %15 = vector.broadcast %cst_11 : f32 to vector<8x128xf32>
    %16 = arith.maximumf %14, %15 : vector<8x128xf32>
    %17 = arith.truncf %16 : vector<8x128xf32> to vector<8x128xbf16>
    %c0_12 = arith.constant 0 : index
    %c0_13 = arith.constant 0 : index
    %18 = vector.load %arg6[%c0_12, %c0_13] : memref<128x128xbf16, #tpu.memory_space<vmem>>, vector<128x128xbf16>
    %cst_14 = arith.constant dense<0.000000e+00> : vector<8x128xf32>
    %19 = tpu.matmul %17, %18, %cst_14 {dimension_numbers = #tpu.dot_dimension_numbers<[1], [0], [0], [1], [0, 0, 1, 1], [], []>} : vector<8x128xbf16>, vector<128x128xbf16>, vector<8x128xf32> -> vector<8x128xf32>
    %c0_15 = arith.constant 0 : index
    %c0_16 = arith.constant 0 : index
    %20 = vector.load %arg7[%c0_15, %c0_16] : memref<1x128xf32, #tpu.memory_space<vmem>>, vector<1x128xf32>
    %21 = vector.broadcast %20 : vector<1x128xf32> to vector<8x128xf32>
    %22 = arith.addf %19, %21 : vector<8x128xf32>
    %cst_17 = arith.constant dense<0xFF800000> : vector<8xf32>
    %23 = vector.multi_reduction <maximumf>, %22, %cst_17 [1] : vector<8x128xf32> to vector<8xf32>
    %24 = vector.shape_cast %23 : vector<8xf32> to vector<8x1xf32>
    %25 = vector.broadcast %24 : vector<8x1xf32> to vector<8x128xf32>
    %26 = arith.subf %22, %25 : vector<8x128xf32>
    %27 = math.exp %26 : vector<8x128xf32>
    %cst_18 = arith.constant dense<0.000000e+00> : vector<8xf32>
    %28 = vector.multi_reduction <add>, %27, %cst_18 [1] : vector<8x128xf32> to vector<8xf32>
    %29 = vector.shape_cast %28 : vector<8xf32> to vector<8x1xf32>
    %30 = math.log %29 : vector<8x1xf32>
    %31 = vector.broadcast %30 : vector<8x1xf32> to vector<8x128xf32>
    %32 = arith.subf %26, %31 : vector<8x128xf32>
    %c0_19 = arith.constant 0 : index
    %c0_20 = arith.constant 0 : index
    %33 = vector.load %arg8[%c0_19, %c0_20] : memref<8x128xf32, #tpu.memory_space<vmem>>, vector<8x128xf32>
    tpu.vector_store %arg8[%c0_19, %c0_20], %32 {strides = array<i32>} : memref<8x128xf32, #tpu.memory_space<vmem>>, vector<8x128xf32>,
    return
  }
  func.func @transform_0(%arg0: i32) -> (i32, i32) {
    %c0_i32 = arith.constant 0 : i32
    %c0_i32_0 = arith.constant 0 : i32
    return %arg0, %c0_i32 : i32, i32
  }
  func.func @transform_1(%arg0: i32) -> (i32, i32) {
    %c0_i32 = arith.constant 0 : i32
    %c0_i32_0 = arith.constant 0 : i32
    %c0_i32_1 = arith.constant 0 : i32
    return %c0_i32, %c0_i32_0 : i32, i32
  }
  func.func @transform_2(%arg0: i32) -> (i32, i32) {
    %c0_i32 = arith.constant 0 : i32
    %c0_i32_0 = arith.constant 0 : i32
    %c0_i32_1 = arith.constant 0 : i32
    return %c0_i32, %c0_i32_0 : i32, i32
  }
  func.func @transform_3(%arg0: i32) -> (i32, i32) {
    %c0_i32 = arith.constant 0 : i32
    %c0_i32_0 = arith.constant 0 : i32
    %c0_i32_1 = arith.constant 0 : i32
    return %c0_i32, %c0_i32_0 : i32, i32
  }
  func.func @transform_4(%arg0: i32) -> (i32, i32) {
    %c0_i32 = arith.constant 0 : i32
    %c0_i32_0 = arith.constant 0 : i32
    %c0_i32_1 = arith.constant 0 : i32
    return %c0_i32, %c0_i32_0 : i32, i32
  }
  func.func @transform_5(%arg0: i32) -> (i32, i32) {
    %c0_i32 = arith.constant 0 : i32
    %c0_i32_0 = arith.constant 0 : i32
    %c0_i32_1 = arith.constant 0 : i32
    return %c0_i32, %c0_i32_0 : i32, i32
  }
  func.func @transform_6(%arg0: i32) -> (i32, i32) {
    %c0_i32 = arith.constant 0 : i32
    %c0_i32_0 = arith.constant 0 : i32
    %c0_i32_1 = arith.constant 0 : i32
    return %c0_i32, %c0_i32_0 : i32, i32
  }
  func.func @transform_7(%arg0: i32) -> (i32, i32) {
    %c0_i32 = arith.constant 0 : i32
    %c0_i32_0 = arith.constant 0 : i32
    return %arg0, %c0_i32 : i32, i32
  }
}

</mosaic_0001>

<llo_original>
// kernel: rede_forward.1
$region0: #{rede_forward.1}
  #allocation0 [shape = 'u32[]', space=smem, size = 0x4, offset = 0x4, fixed_abs, tag = 'smem constant byte address 0x4 - core index']
  #allocation1 [shape = 'u32[72,128]{1,0:T(1,128)}', space=vmem, size = 0x9000, scoped, tag = 'internal scratch']
  %s0 = inlined_call_operand.hbm [shape: f32[8,784], index: 0, kind: input, shape index: {}]
  %s1 = inlined_call_operand.hbm [shape: bf16[784,128], index: 1, kind: input, shape index: {}]
  %s2 = inlined_call_operand.hbm [shape: f32[1,128], index: 2, kind: input, shape index: {}]
  %s3 = inlined_call_operand.hbm [shape: bf16[128,128], index: 3, kind: input, shape index: {}]
  %s4 = inlined_call_operand.vmem [shape: f32[1,128], index: 4, kind: input, shape index: {}]
  %s5 = inlined_call_operand.hbm [shape: bf16[128,128], index: 5, kind: input, shape index: {}]
  %s6 = inlined_call_operand.vmem [shape: f32[1,128], index: 6, kind: input, shape index: {}]
  %s7 = inlined_call_operand.hbm [shape: f32[8,128], index: 7, kind: output, shape index: {}]
  %s8 = sld [smem:[#allocation0]]
  $region58: #{rede_forward.1} parent=0
    _
  %s10 = ssub.s32 1, %s8
  %s11 = scalar_select 0, %s10, %s8
  $region1: #{rede_forward.1} parent=0
    #allocation2 [shape = 'u8[28672]{0}', space=vmem, size = 0x7000, scoped, tag = 'input window, operand 0, single buffered']
    #allocation3 [shape = 's32[1]{0}', space=sflag, size = 0x4, scoped, tag = 'scoped memory for rede_forward.1']
    #allocation4 [shape = 's32[1]{0}', space=sflag, size = 0x4, scoped, tag = 'scoped memory for rede_forward.1']
    #allocation5 [shape = 'u8[200704]{0}', space=vmem, size = 0x31000, scoped, tag = 'input window, operand 1, single buffered']
    #allocation6 [shape = 's32[1]{0}', space=sflag, size = 0x4, scoped, tag = 'scoped memory for rede_forward.1']
    #allocation7 [shape = 'u8[512]{0}', space=vmem, size = 0x400, scoped, tag = 'input window, operand 2, single buffered']
    #allocation8 [shape = 'u8[32768]{0}', space=vmem, size = 0x8000, scoped, tag = 'input window, operand 3, single buffered']
    #allocation9 [shape = 's32[1]{0}', space=sflag, size = 0x4, scoped, tag = 'scoped memory for rede_forward.1']
    #allocation10 [shape = 'u8[32768]{0}', space=vmem, size = 0x8000, scoped, tag = 'input window, operand 5, single buffered']
    #allocation11 [shape = 'u8[4096]{0}', space=vmem, size = 0x1000, scoped, tag = 'output window, operand 0, single buffered']
    %12 = vsyncpa [#allocation3], 0
    %13 = vsyncpa [#allocation6], 0
    %14 = vsyncpa [#allocation9], 0
    %15 = vsyncpa [#allocation4], 0
    // Predicated region
    $region2: #{rede_forward.1} parent=1 // pred_check
      _
    $region3: #{rede_forward.1} parent=1 // pred_check_branch
      %17 = sbr.rel (0) target = $region5
    $region4: #{rede_forward.1} parent=1 // pred_region
      %19 = vsyncadd [#allocation3], 0
      %s21 = sshll.u32 %s0, 4
      %s22 = int_to_ptr.hbm [resolvable:$true] %s21
      %s23 = sshll.u32 [#allocation2], 4
      %s24 = int_to_ptr.vmem [resolvable:$true] %s23
      %26 = dma.hbm_to_vmem [thread:$0]  %s22, 896, %s24, [#allocation3]
    $region5: #{rede_forward.1} parent=1 // pred_fallthru
      _
    // Predicated region
    $region6: #{rede_forward.1} parent=1 // pred_check
      _
    $region7: #{rede_forward.1} parent=1 // pred_check_branch
      %28 = sbr.rel (0) target = $region9
    $region8: #{rede_forward.1} parent=1 // pred_region
      %30 = vsyncadd [#allocation6], 0
      %s31 = sshll.u32 %s1, 4
      %s32 = int_to_ptr.hbm [resolvable:$true] %s31
      %s33 = sshll.u32 [#allocation5], 4
      %s34 = int_to_ptr.vmem [resolvable:$true] %s33
      %39 = dma.hbm_to_vmem [thread:$0]  %s32, 6272, %s34, [#allocation6], 64, 64, 4
    $region9: #{rede_forward.1} parent=1 // pred_fallthru
      _
    // Predicated region
    $region10: #{rede_forward.1} parent=1 // pred_check
      _
    $region11: #{rede_forward.1} parent=1 // pred_check_branch
      %41 = sbr.rel (0) target = $region13
    $region12: #{rede_forward.1} parent=1 // pred_region
      %43 = vsyncadd [#allocation6], 0
      %s45 = sshll.u32 %s2, 4
      %s46 = int_to_ptr.hbm [resolvable:$true] %s45
      %s47 = sshll.u32 [#allocation7], 4
      %s48 = int_to_ptr.vmem [resolvable:$true] %s47
      %50 = dma.hbm_to_vmem [thread:$0]  %s46, 16, %s48, [#allocation6]
    $region13: #{rede_forward.1} parent=1 // pred_fallthru
      _
    // Predicated region
    $region14: #{rede_forward.1} parent=1 // pred_check
      _
    $region15: #{rede_forward.1} parent=1 // pred_check_branch
      %52 = sbr.rel (0) target = $region17
    $region16: #{rede_forward.1} parent=1 // pred_region
      %54 = vsyncadd [#allocation9], 0
      %s55 = sshll.u32 %s3, 4
      %s56 = int_to_ptr.hbm [resolvable:$true] %s55
      %s57 = sshll.u32 [#allocation8], 4
      %s58 = int_to_ptr.vmem [resolvable:$true] %s57
      %63 = dma.hbm_to_vmem [thread:$0]  %s56, 1024, %s58, [#allocation9], 64, 64, 4
    $region17: #{rede_forward.1} parent=1 // pred_fallthru
      _
    // Predicated region
    $region18: #{rede_forward.1} parent=1 // pred_check
      _
    $region19: #{rede_forward.1} parent=1 // pred_check_branch
      %65 = sbr.rel (0) target = $region21
    $region20: #{rede_forward.1} parent=1 // pred_region
      _
    $region21: #{rede_forward.1} parent=1 // pred_fallthru
      _
    // Predicated region
    $region22: #{rede_forward.1} parent=1 // pred_check
      _
    $region23: #{rede_forward.1} parent=1 // pred_check_branch
      %67 = sbr.rel (0) target = $region25
    $region24: #{rede_forward.1} parent=1 // pred_region
      %69 = vsyncadd [#allocation9], 0
      %s70 = sshll.u32 %s5, 4
      %s71 = int_to_ptr.hbm [resolvable:$true] %s70
      %s72 = sshll.u32 [#allocation10], 4
      %s73 = int_to_ptr.vmem [resolvable:$true] %s72
      %78 = dma.hbm_to_vmem [thread:$0]  %s71, 1024, %s73, [#allocation9], 64, 64, 4
    $region25: #{rede_forward.1} parent=1 // pred_fallthru
      _
    // Predicated region
    $region26: #{rede_forward.1} parent=1 // pred_check
      _
    $region27: #{rede_forward.1} parent=1 // pred_check_branch
      %80 = sbr.rel (0) target = $region29
    $region28: #{rede_forward.1} parent=1 // pred_region
      _
    $region29: #{rede_forward.1} parent=1 // pred_fallthru
      _
    // Predicated region
    $region30: #{rede_forward.1} parent=1 // pred_check
      _
    $region31: #{rede_forward.1} parent=1 // pred_check_branch
      %82 = sbr.rel (0) target = $region33
    $region32: #{rede_forward.1} parent=1 // pred_region
      %84 = dma.done [#allocation3], 896
    $region33: #{rede_forward.1} parent=1 // pred_fallthru
      _
    // Predicated region
    $region34: #{rede_forward.1} parent=1 // pred_check
      _
    $region35: #{rede_forward.1} parent=1 // pred_check_branch
      %86 = sbr.rel (0) target = $region37
    $region36: #{rede_forward.1} parent=1 // pred_region
      %88 = dma.done [#allocation6], 6272
    $region37: #{rede_forward.1} parent=1 // pred_fallthru
      _
    // Predicated region
    $region38: #{rede_forward.1} parent=1 // pred_check
      _
    $region39: #{rede_forward.1} parent=1 // pred_check_branch
      %90 = sbr.rel (0) target = $region41
    $region40: #{rede_forward.1} parent=1 // pred_region
      %92 = dma.done [#allocation6], 16
    $region41: #{rede_forward.1} parent=1 // pred_fallthru
      _
    // Predicated region
    $region42: #{rede_forward.1} parent=1 // pred_check
      _
    $region43: #{rede_forward.1} parent=1 // pred_check_branch
      %94 = sbr.rel (0) target = $region45
    $region44: #{rede_forward.1} parent=1 // pred_region
      %96 = dma.done [#allocation9], 1024
    $region45: #{rede_forward.1} parent=1 // pred_fallthru
      _
    // Predicated region
    $region46: #{rede_forward.1} parent=1 // pred_check
      _
    $region47: #{rede_forward.1} parent=1 // pred_check_branch
      %98 = sbr.rel (0) target = $region49
    $region48: #{rede_forward.1} parent=1 // pred_region
      %100 = dma.done [#allocation9], 1024
    $region49: #{rede_forward.1} parent=1 // pred_fallthru
      _
    %v102 = vld [vmem:[#allocation2] sm:$0xff]
    %v103 = vld [vmem:[#allocation2 + $0x8] sm:$0xff]
    %v104 = vld [vmem:[#allocation2 + $0x10] sm:$0xff]
    %v105 = vld [vmem:[#allocation2 + $0x18] sm:$0xff]
    %v106 = vld [vmem:[#allocation2 + $0x20] sm:$0xff]
    %v107 = vld [vmem:[#allocation2 + $0x28] sm:$0xff]
    %v108 = vld [vmem:[#allocation2 + $0x30] sm:$0xff]
    %v109 = vpack.c.bf16 %v102, %v102
    %v110 = vpack.c.bf16 %v103, %v103
    %v111 = vpack.c.bf16 %v104, %v104
    %v112 = vpack.c.bf16 %v105, %v105
    %v113 = vpack.c.bf16 %v106, %v106
    %v114 = vpack.c.bf16 %v107, %v107
    %v115 = vpack.c.bf16 %v108, %v108
    %v116 = vld [vmem:[#allocation5] sm:$0xf]
    %v117 = vld [vmem:[#allocation5 + $0x4] sm:$0xf]
    %v118 = vld [vmem:[#allocation5 + $0x8] sm:$0xf]
    %v119 = vld [vmem:[#allocation5 + $0xc] sm:$0xf]
    %v120 = vld [vmem:[#allocation5 + $0x10] sm:$0xf]
    %v121 = vld [vmem:[#allocation5 + $0x14] sm:$0xf]
    %v122 = vld [vmem:[#allocation5 + $0x18] sm:$0xf]
    %v123 = vld [vmem:[#allocation5 + $0x1c] sm:$0xf]
    %v124 = vld [vmem:[#allocation5 + $0x20] sm:$0xf]
    %v125 = vld [vmem:[#allocation5 + $0x24] sm:$0xf]
    %v126 = vld [vmem:[#allocation5 + $0x28] sm:$0xf]
    %v127 = vld [vmem:[#allocation5 + $0x2c] sm:$0xf]
    %v128 = vld [vmem:[#allocation5 + $0x30] sm:$0xf]
    %v129 = vld [vmem:[#allocation5 + $0x34] sm:$0xf]
    %v130 = vld [vmem:[#allocation5 + $0x38] sm:$0xf]
    %v131 = vld [vmem:[#allocation5 + $0x3c] sm:$0xf]
    %v132 = vld [vmem:[#allocation5 + $0x40] sm:$0xf]
    %v133 = vld [vmem:[#allocation5 + $0x44] sm:$0xf]
    %v134 = vld [vmem:[#allocation5 + $0x48] sm:$0xf]
    %v135 = vld [vmem:[#allocation5 + $0x4c] sm:$0xf]
    %v136 = vld [vmem:[#allocation5 + $0x50] sm:$0xf]
    %v137 = vld [vmem:[#allocation5 + $0x54] sm:$0xf]
    %v138 = vld [vmem:[#allocation5 + $0x58] sm:$0xf]
    %v139 = vld [vmem:[#allocation5 + $0x5c] sm:$0xf]
    %v140 = vld [vmem:[#allocation5 + $0x60] sm:$0xf]
    %v141 = vld [vmem:[#allocation5 + $0x64] sm:$0xf]
    %v142 = vld [vmem:[#allocation5 + $0x68] sm:$0xf]
    %v143 = vld [vmem:[#allocation5 + $0x6c] sm:$0xf]
    %v144 = vld [vmem:[#allocation5 + $0x70] sm:$0xf]
    %v145 = vld [vmem:[#allocation5 + $0x74] sm:$0xf]
    %v146 = vld [vmem:[#allocation5 + $0x78] sm:$0xf]
    %v147 = vld [vmem:[#allocation5 + $0x7c] sm:$0xf]
    %v148 = vld [vmem:[#allocation5 + $0x80] sm:$0xf]
    %v149 = vld [vmem:[#allocation5 + $0x84] sm:$0xf]
    %v150 = vld [vmem:[#allocation5 + $0x88] sm:$0xf]
    %v151 = vld [vmem:[#allocation5 + $0x8c] sm:$0xf]
    %v152 = vld [vmem:[#allocation5 + $0x90] sm:$0xf]
    %v153 = vld [vmem:[#allocation5 + $0x94] sm:$0xf]
    %v154 = vld [vmem:[#allocation5 + $0x98] sm:$0xf]
    %v155 = vld [vmem:[#allocation5 + $0x9c] sm:$0xf]
    %v156 = vld [vmem:[#allocation5 + $0xa0] sm:$0xf]
    %v157 = vld [vmem:[#allocation5 + $0xa4] sm:$0xf]
    %v158 = vld [vmem:[#allocation5 + $0xa8] sm:$0xf]
    %v159 = vld [vmem:[#allocation5 + $0xac] sm:$0xf]
    %v160 = vld [vmem:[#allocation5 + $0xb0] sm:$0xf]
    %v161 = vld [vmem:[#allocation5 + $0xb4] sm:$0xf]
    %v162 = vld [vmem:[#allocation5 + $0xb8] sm:$0xf]
    %v163 = vld [vmem:[#allocation5 + $0xbc] sm:$0xf]
    %v164 = vld [vmem:[#allocation5 + $0xc0] sm:$0xf]
    %v165 = vld [vmem:[#allocation5 + $0xc4] sm:$0xf]
    %v166 = vld [vmem:[#allocation5 + $0xc8] sm:$0xf]
    %v167 = vld [vmem:[#allocation5 + $0xcc] sm:$0xf]
    %v168 = vld [vmem:[#allocation5 + $0xd0] sm:$0xf]
    %v169 = vld [vmem:[#allocation5 + $0xd4] sm:$0xf]
    %v170 = vld [vmem:[#allocation5 + $0xd8] sm:$0xf]
    %v171 = vld [vmem:[#allocation5 + $0xdc] sm:$0xf]
    %v172 = vld [vmem:[#allocation5 + $0xe0] sm:$0xf]
    %v173 = vld [vmem:[#allocation5 + $0xe4] sm:$0xf]
    %v174 = vld [vmem:[#allocation5 + $0xe8] sm:$0xf]
    %v175 = vld [vmem:[#allocation5 + $0xec] sm:$0xf]
    %v176 = vld [vmem:[#allocation5 + $0xf0] sm:$0xf]
    %v177 = vld [vmem:[#allocation5 + $0xf4] sm:$0xf]
    %v178 = vld [vmem:[#allocation5 + $0xf8] sm:$0xf]
    %v179 = vld [vmem:[#allocation5 + $0xfc] sm:$0xf]
    %v180 = vld [vmem:[#allocation5 + $0x100] sm:$0xf]
    %v181 = vld [vmem:[#allocation5 + $0x104] sm:$0xf]
    %v182 = vld [vmem:[#allocation5 + $0x108] sm:$0xf]
    %v183 = vld [vmem:[#allocation5 + $0x10c] sm:$0xf]
    %v184 = vld [vmem:[#allocation5 + $0x110] sm:$0xf]
    %v185 = vld [vmem:[#allocation5 + $0x114] sm:$0xf]
    %v186 = vld [vmem:[#allocation5 + $0x118] sm:$0xf]
    %v187 = vld [vmem:[#allocation5 + $0x11c] sm:$0xf]
    %v188 = vld [vmem:[#allocation5 + $0x120] sm:$0xf]
    %v189 = vld [vmem:[#allocation5 + $0x124] sm:$0xf]
    %v190 = vld [vmem:[#allocation5 + $0x128] sm:$0xf]
    %v191 = vld [vmem:[#allocation5 + $0x12c] sm:$0xf]
    %v192 = vld [vmem:[#allocation5 + $0x130] sm:$0xf]
    %v193 = vld [vmem:[#allocation5 + $0x134] sm:$0xf]
    %v194 = vld [vmem:[#allocation5 + $0x138] sm:$0xf]
    %v195 = vld [vmem:[#allocation5 + $0x13c] sm:$0xf]
    %v196 = vld [vmem:[#allocation5 + $0x140] sm:$0xf]
    %v197 = vld [vmem:[#allocation5 + $0x144] sm:$0xf]
    %v198 = vld [vmem:[#allocation5 + $0x148] sm:$0xf]
    %v199 = vld [vmem:[#allocation5 + $0x14c] sm:$0xf]
    %v200 = vld [vmem:[#allocation5 + $0x150] sm:$0xf]
    %v201 = vld [vmem:[#allocation5 + $0x154] sm:$0xf]
    %v202 = vld [vmem:[#allocation5 + $0x158] sm:$0xf]
    %v203 = vld [vmem:[#allocation5 + $0x15c] sm:$0xf]
    %v204 = vld [vmem:[#allocation5 + $0x160] sm:$0xf]
    %v205 = vld [vmem:[#allocation5 + $0x164] sm:$0xf]
    %v206 = vld [vmem:[#allocation5 + $0x168] sm:$0xf]
    %v207 = vld [vmem:[#allocation5 + $0x16c] sm:$0xf]
    %v208 = vld [vmem:[#allocation5 + $0x170] sm:$0xf]
    %v209 = vld [vmem:[#allocation5 + $0x174] sm:$0xf]
    %v210 = vld [vmem:[#allocation5 + $0x178] sm:$0xf]
    %v211 = vld [vmem:[#allocation5 + $0x17c] sm:$0xf]
    %v212 = vld [vmem:[#allocation5 + $0x180] sm:$0xf]
    %v213 = vld [vmem:[#allocation5 + $0x184] sm:$0xf]
    %v214 = vld [vmem:[#allocation7] sm:$0x1]
    %v216 = vperm.slane %v214, 0
    %v316 = vunpack.c.l.b16 %v116
    %v317 = vunpack.c.l.b16 %v117
    %v318 = vunpack.c.l.b16 %v118
    %v319 = vunpack.c.l.b16 %v119
    %v320 = vunpack.c.l.b16 %v120
    %v321 = vunpack.c.l.b16 %v121
    %v322 = vunpack.c.l.b16 %v122
    %v323 = vunpack.c.l.b16 %v123
    %v324 = vunpack.c.l.b16 %v124
    %v325 = vunpack.c.l.b16 %v125
    %v326 = vunpack.c.l.b16 %v126
    %v327 = vunpack.c.l.b16 %v127
    %v328 = vunpack.c.l.b16 %v128
    %v329 = vunpack.c.l.b16 %v129
    %v330 = vunpack.c.l.b16 %v130
    %v331 = vunpack.c.l.b16 %v131
    %v332 = vunpack.c.l.b16 %v132
    %v333 = vunpack.c.l.b16 %v133
    %v334 = vunpack.c.l.b16 %v134
    %v335 = vunpack.c.l.b16 %v135
    %v336 = vunpack.c.l.b16 %v136
    %v337 = vunpack.c.l.b16 %v137
    %v338 = vunpack.c.l.b16 %v138
    %v339 = vunpack.c.l.b16 %v139
    %v340 = vunpack.c.l.b16 %v140
    %v341 = vunpack.c.l.b16 %v141
    %v342 = vunpack.c.l.b16 %v142
    %v343 = vunpack.c.l.b16 %v143
    %v344 = vunpack.c.l.b16 %v144
    %v345 = vunpack.c.l.b16 %v145
    %v346 = vunpack.c.l.b16 %v146
    %v347 = vunpack.c.l.b16 %v147
    %v348 = vunpack.c.l.b16 %v148
    %v349 = vunpack.c.l.b16 %v149
    %v350 = vunpack.c.l.b16 %v150
    %v351 = vunpack.c.l.b16 %v151
    %v352 = vunpack.c.l.b16 %v152
    %v353 = vunpack.c.l.b16 %v153
    %v354 = vunpack.c.l.b16 %v154
    %v355 = vunpack.c.l.b16 %v155
    %v356 = vunpack.c.l.b16 %v156
    %v357 = vunpack.c.l.b16 %v157
    %v358 = vunpack.c.l.b16 %v158
    %v359 = vunpack.c.l.b16 %v159
    %v360 = vunpack.c.l.b16 %v160
    %v361 = vunpack.c.l.b16 %v161
    %v362 = vunpack.c.l.b16 %v162
    %v363 = vunpack.c.l.b16 %v163
    %v364 = vunpack.c.l.b16 %v164
    %v365 = vunpack.c.l.b16 %v165
    %v366 = vunpack.c.l.b16 %v166
    %v367 = vunpack.c.l.b16 %v167
    %v368 = vunpack.c.l.b16 %v168
    %v369 = vunpack.c.l.b16 %v169
    %v370 = vunpack.c.l.b16 %v170
    %v371 = vunpack.c.l.b16 %v171
    %v372 = vunpack.c.l.b16 %v172
    %v373 = vunpack.c.l.b16 %v173
    %v374 = vunpack.c.l.b16 %v174
    %v375 = vunpack.c.l.b16 %v175
    %v376 = vunpack.c.l.b16 %v176
    %v377 = vunpack.c.l.b16 %v177
    %v378 = vunpack.c.l.b16 %v178
    %v379 = vunpack.c.l.b16 %v179
    %v380 = vunpack.c.l.b16 %v180
    %v381 = vunpack.c.l.b16 %v181
    %v382 = vunpack.c.l.b16 %v182
    %v383 = vunpack.c.l.b16 %v183
    %v384 = vunpack.c.l.b16 %v184
    %v385 = vunpack.c.l.b16 %v185
    %v386 = vunpack.c.l.b16 %v186
    %v387 = vunpack.c.l.b16 %v187
    %v388 = vunpack.c.l.b16 %v188
    %v389 = vunpack.c.l.b16 %v189
    %v390 = vunpack.c.l.b16 %v190
    %v391 = vunpack.c.l.b16 %v191
    %v392 = vunpack.c.l.b16 %v192
    %v393 = vunpack.c.l.b16 %v193
    %v394 = vunpack.c.l.b16 %v194
    %v395 = vunpack.c.l.b16 %v195
    %v396 = vunpack.c.l.b16 %v196
    %v397 = vunpack.c.l.b16 %v197
    %v398 = vunpack.c.l.b16 %v198
    %v399 = vunpack.c.l.b16 %v199
    %v400 = vunpack.c.l.b16 %v200
    %v401 = vunpack.c.l.b16 %v201
    %v402 = vunpack.c.l.b16 %v202
    %v403 = vunpack.c.l.b16 %v203
    %v404 = vunpack.c.l.b16 %v204
    %v405 = vunpack.c.l.b16 %v205
    %v406 = vunpack.c.l.b16 %v206
    %v407 = vunpack.c.l.b16 %v207
    %v408 = vunpack.c.l.b16 %v208
    %v409 = vunpack.c.l.b16 %v209
    %v410 = vunpack.c.l.b16 %v210
    %v411 = vunpack.c.l.b16 %v211
    %v412 = vunpack.c.l.b16 %v212
    %v413 = vunpack.c.l.b16 %v213
    %v414 = vpack.c.b16 %v317, %v316
    %v415 = vpack.c.b16 %v319, %v318
    %v416 = vpack.c.b16 %v321, %v320
    %v417 = vpack.c.b16 %v323, %v322
    %v418 = vpack.c.b16 %v325, %v324
    %v419 = vpack.c.b16 %v327, %v326
    %v420 = vpack.c.b16 %v329, %v328
    %v421 = vpack.c.b16 %v331, %v330
    %v422 = vpack.c.b16 %v333, %v332
    %v423 = vpack.c.b16 %v335, %v334
    %v424 = vpack.c.b16 %v337, %v336
    %v425 = vpack.c.b16 %v339, %v338
    %v426 = vpack.c.b16 %v341, %v340
    %v427 = vpack.c.b16 %v343, %v342
    %v428 = vpack.c.b16 %v345, %v344
    %v429 = vpack.c.b16 %v347, %v346
    %v430 = vpack.c.b16 %v349, %v348
    %v431 = vpack.c.b16 %v351, %v350
    %v432 = vpack.c.b16 %v353, %v352
    %v433 = vpack.c.b16 %v355, %v354
    %v434 = vpack.c.b16 %v357, %v356
    %v435 = vpack.c.b16 %v359, %v358
    %v436 = vpack.c.b16 %v361, %v360
    %v437 = vpack.c.b16 %v363, %v362
    %v438 = vpack.c.b16 %v365, %v364
    %v439 = vpack.c.b16 %v367, %v366
    %v440 = vpack.c.b16 %v369, %v368
    %v441 = vpack.c.b16 %v371, %v370
    %v442 = vpack.c.b16 %v373, %v372
    %v443 = vpack.c.b16 %v375, %v374
    %v444 = vpack.c.b16 %v377, %v376
    %v445 = vpack.c.b16 %v379, %v378
    %v446 = vpack.c.b16 %v381, %v380
    %v447 = vpack.c.b16 %v383, %v382
    %v448 = vpack.c.b16 %v385, %v384
    %v449 = vpack.c.b16 %v387, %v386
    %v450 = vpack.c.b16 %v389, %v388
    %v451 = vpack.c.b16 %v391, %v390
    %v452 = vpack.c.b16 %v393, %v392
    %v453 = vpack.c.b16 %v395, %v394
    %v454 = vpack.c.b16 %v397, %v396
    %v455 = vpack.c.b16 %v399, %v398
    %v456 = vpack.c.b16 %v401, %v400
    %v457 = vpack.c.b16 %v403, %v402
    %v458 = vpack.c.b16 %v405, %v404
    %v459 = vpack.c.b16 %v407, %v406
    %v460 = vpack.c.b16 %v409, %v408
    %v461 = vpack.c.b16 %v411, %v410
    %v462 = vpack.c.b16 %v413, %v412
    %vm512 = vcmask 130048
    %v514 = vsel %vm512, %v115, 0
    %516 = vmatpush.bf16.msra.mxu0 %v421
    %517 = vmatpush.bf16.msra.mxu0 %v420
    %518 = vmatpush.bf16.msra.mxu0 %v419
    %519 = vmatpush.bf16.msra.mxu0 %v418
    %520 = vmatpush.bf16.msra.mxu0 %v417
    %521 = vmatpush.bf16.msra.mxu0 %v416
    %522 = vmatpush.bf16.msra.mxu0 %v415
    %523 = vmatpush.bf16.msra.mxu0 %v414
    %524 = vmatmul.bf16.gmra.mxu0 %v109
    %v525 = vpop.f32.mrf.mxu0
    %v526 = vadd.f32 %v216, %v525
    %v527 = vpop.f32.mrf.mxu0
    %528 = vdwg.mxu0
    %529 = vmatpush.bf16.msra.mxu0 %v429
    %530 = vmatpush.bf16.msra.mxu0 %v428
    %531 = vmatpush.bf16.msra.mxu0 %v427
    %532 = vmatpush.bf16.msra.mxu0 %v426
    %533 = vmatpush.bf16.msra.mxu0 %v425
    %534 = vmatpush.bf16.msra.mxu0 %v424
    %535 = vmatpush.bf16.msra.mxu0 %v423
    %536 = vmatpush.bf16.msra.mxu0 %v422
    %537 = vmatmul.bf16.gmra.mxu0 %v110
    %v538 = vpop.f32.mrf.mxu0
    %v539 = vadd.f32 %v526, %v538
    %v540 = vpop.f32.mrf.mxu0
    %541 = vdwg.mxu0
    %542 = vmatpush.bf16.msra.mxu0 %v437
    %543 = vmatpush.bf16.msra.mxu0 %v436
    %544 = vmatpush.bf16.msra.mxu0 %v435
    %545 = vmatpush.bf16.msra.mxu0 %v434
    %546 = vmatpush.bf16.msra.mxu0 %v433
    %547 = vmatpush.bf16.msra.mxu0 %v432
    %548 = vmatpush.bf16.msra.mxu0 %v431
    %549 = vmatpush.bf16.msra.mxu0 %v430
    %550 = vmatmul.bf16.gmra.mxu0 %v111
    %v551 = vpop.f32.mrf.mxu0
    %v552 = vadd.f32 %v539, %v551
    %v553 = vpop.f32.mrf.mxu0
    %554 = vdwg.mxu0
    %555 = vmatpush.bf16.msra.mxu0 %v445
    %556 = vmatpush.bf16.msra.mxu0 %v444
    %557 = vmatpush.bf16.msra.mxu0 %v443
    %558 = vmatpush.bf16.msra.mxu0 %v442
    %559 = vmatpush.bf16.msra.mxu0 %v441
    %560 = vmatpush.bf16.msra.mxu0 %v440
    %561 = vmatpush.bf16.msra.mxu0 %v439
    %562 = vmatpush.bf16.msra.mxu0 %v438
    %563 = vmatmul.bf16.gmra.mxu0 %v112
    %v564 = vpop.f32.mrf.mxu0
    %v565 = vadd.f32 %v552, %v564
    %v566 = vpop.f32.mrf.mxu0
    %567 = vdwg.mxu0
    %568 = vmatpush.bf16.msra.mxu0 %v453
    %569 = vmatpush.bf16.msra.mxu0 %v452
    %570 = vmatpush.bf16.msra.mxu0 %v451
    %571 = vmatpush.bf16.msra.mxu0 %v450
    %572 = vmatpush.bf16.msra.mxu0 %v449
    %573 = vmatpush.bf16.msra.mxu0 %v448
    %574 = vmatpush.bf16.msra.mxu0 %v447
    %575 = vmatpush.bf16.msra.mxu0 %v446
    %576 = vmatmul.bf16.gmra.mxu0 %v113
    %v577 = vpop.f32.mrf.mxu0
    %v578 = vadd.f32 %v565, %v577
    %v579 = vpop.f32.mrf.mxu0
    %580 = vdwg.mxu0
    %581 = vmatpush.bf16.msra.mxu0 %v461
    %582 = vmatpush.bf16.msra.mxu0 %v460
    %583 = vmatpush.bf16.msra.mxu0 %v459
    %584 = vmatpush.bf16.msra.mxu0 %v458
    %585 = vmatpush.bf16.msra.mxu0 %v457
    %586 = vmatpush.bf16.msra.mxu0 %v456
    %587 = vmatpush.bf16.msra.mxu0 %v455
    %588 = vmatpush.bf16.msra.mxu0 %v454
    %589 = vmatmul.bf16.gmra.mxu0 %v114
    %v590 = vpop.f32.mrf.mxu0
    %v591 = vadd.f32 %v578, %v590
    %v592 = vpop.f32.mrf.mxu0
    %593 = vdwg.mxu0
    %594 = vmatpush.bf16.msra.mxu0 0
    %595 = vmatpush.bf16.msra.mxu0 0
    %596 = vmatpush.bf16.msra.mxu0 0
    %597 = vmatpush.bf16.msra.mxu0 0
    %598 = vmatpush.bf16.msra.mxu0 0
    %599 = vmatpush.bf16.msra.mxu0 0
    %600 = vmatpush.bf16.msra.mxu0 0
    %601 = vmatpush.bf16.msra.mxu0 %v462
    %602 = vmatmul.bf16.gmra.mxu0 %v514
    %v603 = vpop.f32.mrf.mxu0
    %v604 = vadd.f32 %v591, %v603
    %v605 = vpop.f32.mrf.mxu0
    %606 = vdwg.mxu0
    %v607 = vmax.f32 %v604, 0.0
    %v608 = vpack.c.bf16 %v607, %v607
    %v609 = vld [vmem:[#allocation8] sm:$0xf]
    %v610 = vld [vmem:[#allocation8 + $0x4] sm:$0xf]
    %v611 = vld [vmem:[#allocation8 + $0x8] sm:$0xf]
    %v612 = vld [vmem:[#allocation8 + $0xc] sm:$0xf]
    %v613 = vld [vmem:[#allocation8 + $0x10] sm:$0xf]
    %v614 = vld [vmem:[#allocation8 + $0x14] sm:$0xf]
    %v615 = vld [vmem:[#allocation8 + $0x18] sm:$0xf]
    %v616 = vld [vmem:[#allocation8 + $0x1c] sm:$0xf]
    %v617 = vld [vmem:[#allocation8 + $0x20] sm:$0xf]
    %v618 = vld [vmem:[#allocation8 + $0x24] sm:$0xf]
    %v619 = vld [vmem:[#allocation8 + $0x28] sm:$0xf]
    %v620 = vld [vmem:[#allocation8 + $0x2c] sm:$0xf]
    %v621 = vld [vmem:[#allocation8 + $0x30] sm:$0xf]
    %v622 = vld [vmem:[#allocation8 + $0x34] sm:$0xf]
    %v623 = vld [vmem:[#allocation8 + $0x38] sm:$0xf]
    %v624 = vld [vmem:[#allocation8 + $0x3c] sm:$0xf]
    %v625 = vld [vmem:[%s4] sm:$0x1]
    %v627 = vperm.slane %v625, 0
    %v645 = vunpack.c.l.b16 %v609
    %v646 = vunpack.c.l.b16 %v610
    %v647 = vunpack.c.l.b16 %v611
    %v648 = vunpack.c.l.b16 %v612
    %v649 = vunpack.c.l.b16 %v613
    %v650 = vunpack.c.l.b16 %v614
    %v651 = vunpack.c.l.b16 %v615
    %v652 = vunpack.c.l.b16 %v616
    %v653 = vunpack.c.l.b16 %v617
    %v654 = vunpack.c.l.b16 %v618
    %v655 = vunpack.c.l.b16 %v619
    %v656 = vunpack.c.l.b16 %v620
    %v657 = vunpack.c.l.b16 %v621
    %v658 = vunpack.c.l.b16 %v622
    %v659 = vunpack.c.l.b16 %v623
    %v660 = vunpack.c.l.b16 %v624
    %v661 = vpack.c.b16 %v646, %v645
    %v662 = vpack.c.b16 %v648, %v647
    %v663 = vpack.c.b16 %v650, %v649
    %v664 = vpack.c.b16 %v652, %v651
    %v665 = vpack.c.b16 %v654, %v653
    %v666 = vpack.c.b16 %v656, %v655
    %v667 = vpack.c.b16 %v658, %v657
    %v668 = vpack.c.b16 %v660, %v659
    %677 = vmatpush.bf16.msra.mxu0 %v668
    %678 = vmatpush.bf16.msra.mxu0 %v667
    %679 = vmatpush.bf16.msra.mxu0 %v666
    %680 = vmatpush.bf16.msra.mxu0 %v665
    %681 = vmatpush.bf16.msra.mxu0 %v664
    %682 = vmatpush.bf16.msra.mxu0 %v663
    %683 = vmatpush.bf16.msra.mxu0 %v662
    %684 = vmatpush.bf16.msra.mxu0 %v661
    %685 = vmatmul.bf16.gmra.mxu0 %v608
    %v686 = vpop.f32.mrf.mxu0
    %v687 = vadd.f32 %v627, %v686
    %v688 = vpop.f32.mrf.mxu0
    %689 = vdwg.mxu0
    %v690 = vmax.f32 %v687, 0.0
    %v691 = vpack.c.bf16 %v690, %v690
    %v692 = vld [vmem:[#allocation10] sm:$0xf]
    %v693 = vld [vmem:[#allocation10 + $0x4] sm:$0xf]
    %v694 = vld [vmem:[#allocation10 + $0x8] sm:$0xf]
    %v695 = vld [vmem:[#allocation10 + $0xc] sm:$0xf]
    %v696 = vld [vmem:[#allocation10 + $0x10] sm:$0xf]
    %v697 = vld [vmem:[#allocation10 + $0x14] sm:$0xf]
    %v698 = vld [vmem:[#allocation10 + $0x18] sm:$0xf]
    %v699 = vld [vmem:[#allocation10 + $0x1c] sm:$0xf]
    %v700 = vld [vmem:[#allocation10 + $0x20] sm:$0xf]
    %v701 = vld [vmem:[#allocation10 + $0x24] sm:$0xf]
    %v702 = vld [vmem:[#allocation10 + $0x28] sm:$0xf]
    %v703 = vld [vmem:[#allocation10 + $0x2c] sm:$0xf]
    %v704 = vld [vmem:[#allocation10 + $0x30] sm:$0xf]
    %v705 = vld [vmem:[#allocation10 + $0x34] sm:$0xf]
    %v706 = vld [vmem:[#allocation10 + $0x38] sm:$0xf]
    %v707 = vld [vmem:[#allocation10 + $0x3c] sm:$0xf]
    %v708 = vld [vmem:[%s6] sm:$0x1]
    %v710 = vperm.slane %v708, 0
    %v728 = vunpack.c.l.b16 %v692
    %v729 = vunpack.c.l.b16 %v693
    %v730 = vunpack.c.l.b16 %v694
    %v731 = vunpack.c.l.b16 %v695
    %v732 = vunpack.c.l.b16 %v696
    %v733 = vunpack.c.l.b16 %v697
    %v734 = vunpack.c.l.b16 %v698
    %v735 = vunpack.c.l.b16 %v699
    %v736 = vunpack.c.l.b16 %v700
    %v737 = vunpack.c.l.b16 %v701
    %v738 = vunpack.c.l.b16 %v702
    %v739 = vunpack.c.l.b16 %v703
    %v740 = vunpack.c.l.b16 %v704
    %v741 = vunpack.c.l.b16 %v705
    %v742 = vunpack.c.l.b16 %v706
    %v743 = vunpack.c.l.b16 %v707
    %v744 = vpack.c.b16 %v729, %v728
    %v745 = vpack.c.b16 %v731, %v730
    %v746 = vpack.c.b16 %v733, %v732
    %v747 = vpack.c.b16 %v735, %v734
    %v748 = vpack.c.b16 %v737, %v736
    %v749 = vpack.c.b16 %v739, %v738
    %v750 = vpack.c.b16 %v741, %v740
    %v751 = vpack.c.b16 %v743, %v742
    %760 = vmatpush.bf16.msra.mxu0 %v751
    %761 = vmatpush.bf16.msra.mxu0 %v750
    %762 = vmatpush.bf16.msra.mxu0 %v749
    %763 = vmatpush.bf16.msra.mxu0 %v748
    %764 = vmatpush.bf16.msra.mxu0 %v747
    %765 = vmatpush.bf16.msra.mxu0 %v746
    %766 = vmatpush.bf16.msra.mxu0 %v745
    %767 = vmatpush.bf16.msra.mxu0 %v744
    %768 = vmatmul.bf16.gmra.mxu0 %v691
    %v769 = vpop.f32.mrf.mxu0
    %v770 = vadd.f32 %v710, %v769
    %v771 = vpop.f32.mrf.mxu0
    %772 = vdwg.mxu0
    %773 = vmax.xlane.f32.xlu0 %v770
    %v774 = vpop.xlane.xlu0 %773
    %v775 = vsub.f32 %v770, %v774
    %v776 = vmul.f32 %v775, 1.442695
    %v777 = vpow.pop %v776
    %778 = vadd.xlane.f32.xlu0 %v777
    %v779 = vpop.xlane.xlu0 %778
    %v780 = vlog2.pop %v779
    %v781 = vmul.f32 %v780, 0.6931472
    %v782 = vsub.f32 %v775, %v781
    %783 = vst [vmem:[#allocation11] sm:$0xff] %v782
    // Predicated region
    $region50: #{rede_forward.1} parent=1 // pred_check
      _
    $region51: #{rede_forward.1} parent=1 // pred_check_branch
      %785 = sbr.rel (0) target = $region53
    $region52: #{rede_forward.1} parent=1 // pred_region
      %787 = vsyncadd [#allocation4], 0
      %s789 = sshll.u32 [#allocation11], 4
      %s790 = int_to_ptr.vmem [resolvable:$true] %s789
      %s791 = sshll.u32 %s7, 4
      %s792 = int_to_ptr.hbm [resolvable:$true] %s791
      %794 = dma.vmem_to_hbm [thread:$0]  %s790, 128, %s792, [#allocation4]
    $region53: #{rede_forward.1} parent=1 // pred_fallthru
      _
    // Predicated region
    $region54: #{rede_forward.1} parent=1 // pred_check
      _
    $region55: #{rede_forward.1} parent=1 // pred_check_branch
      %796 = sbr.rel (0) target = $region57
    $region56: #{rede_forward.1} parent=1 // pred_region
      %798 = dma.done [#allocation4], 128
    $region57: #{rede_forward.1} parent=1 // pred_fallthru
      _
    %799 = vsyncpa [#allocation3], 1
    %800 = vsyncpa [#allocation6], 1
    %801 = vsyncpa [#allocation9], 1
    %802 = vsyncpa [#allocation4], 1

</llo_original>
